<compile_context>
chip_gen: v7x
topology: tpu7x:2x2x1
jax: 0.10.0
libtpu: 0.0.40
codegen_flags: <defaults>
</compile_context>

<pallas_src>
import functools
import math

import jax
import jax.numpy as jnp
import numpy as np
from jax import lax
from jax.experimental import pallas as pl
from jax.experimental.pallas import tpu as pltpu

BN_EPS = 1e-5
_GUARD = 8                  # zero guard rows at both ends of the assembled halo tile (8-aligned)
_ACC_BYTES = 128 * 1024     # per-chunk live-value budget (f32 accumulator / bf16 tap windows)


def _round_up(x, m):
    return ((x + m - 1) // m) * m


def _vmem_limit_bytes():
    """~3/4 of physical per-core VMEM (leaves headroom; critical on v7x's 64 MiB)."""
    try:
        cap = int(pltpu.get_tpu_info().vmem_capacity_bytes)
    except Exception:
        cap = 64 * 1024 * 1024
    return min(cap * 3 // 4, 96 * 1024 * 1024)


def _pick_row_tile(outer, inner, n_batch, *, max_rows=2048, min_grid=8):
    """Pick t | outer with t*inner <= max_rows, backing off so the grid has >= min_grid steps."""
    divs = [d for d in range(1, outer + 1) if outer % d == 0]
    fit = [d for d in divs if d * inner <= max_rows] or [divs[0]]
    t = fit[-1]
    for d in reversed(fit):          # keep both TensorCores busy on v7x
        t = d
        if n_batch * (outer // d) >= min_grid:
            break
    return t


def _pick_sub(rows, cop, ctot):
    """Largest multiple-of-8 divisor of rows keeping acc (f32) and tap windows (bf16) bounded."""
    cap = max(8, min(rows, _ACC_BYTES // (4 * cop), _ACC_BYTES // (2 * ctot)))
    best = 8
    for d in range(8, cap + 1, 8):
        if rows % d == 0:
            best = d
    return best


# -------------------- kernel 1: 1x1 conv + BN + ReLU + PixelShuffle(2) -------------------- #

def _conv1x1_bn_relu_shuffle_kernel(x_ref, w_ref, sc_ref, sh_ref, o_ref, *, r_img, w_img, half):
    # bf16 MXU inputs, f32 accumulate + epilogue.  Output channels are pre-permuted to
    # (i, j, c) subpixel order, so writing the two i-halves of y into the (r, 2, w, half)
    # block realizes PixelShuffle(2) without any HBM round trip.
    y = jnp.dot(x_ref[...], w_ref[...], preferred_element_type=jnp.float32)
    y = jnp.maximum(y * sc_ref[...] + sh_ref[...], 0.0)
    o_ref[:, 0, :, :] = y[:, :half].reshape(r_img, w_img, half).astype(o_ref.dtype)
    o_ref[:, 1, :, :] = y[:, half:].reshape(r_img, w_img, half).astype(o_ref.dtype)


def _conv1x1_bn_relu_shuffle(x, w1p, sc1, sh1, *, n, h, w, half):
    m, k = x.shape                       # m = n*h*w
    c4 = w1p.shape[1]                    # 4*n_out_p == 2*half
    r_img = _pick_row_tile(h, w, n, max_rows=1024)
    tm = r_img * w
    grid = (n * h) // r_img
    kern = functools.partial(_conv1x1_bn_relu_shuffle_kernel, r_img=r_img, w_img=w, half=half)
    return pl.pallas_call(
        kern,
        out_shape=jax.ShapeDtypeStruct((n * h, 2, w, half), jnp.bfloat16),
        grid=(grid,),
        in_specs=[pl.BlockSpec((tm, k), lambda i: (i, 0)),
                  pl.BlockSpec((k, c4), lambda i: (0, 0)),
                  pl.BlockSpec((1, c4), lambda i: (0, 0)),
                  pl.BlockSpec((1, c4), lambda i: (0, 0))],
        out_specs=pl.BlockSpec((r_img, 2, w, half), lambda i: (i, 0, 0, 0)),
        compiler_params=pltpu.CompilerParams(
            dimension_semantics=("parallel",),
            vmem_limit_bytes=_vmem_limit_bytes()),
    )(x, w1p, sc1, sh1)


# -------- kernel 2: fused [BN_s + ReLU + concat] -> 3x3 conv -> ReLU -> BN (one kernel) -------- #

def _cat_conv3x3_relu_bn_kernel(up_c_ref, up_a_ref, up_b_ref, s_c_ref, s_a_ref, s_b_ref,
                                w_ref, sc2_ref, sh2_ref, sc3_ref, sh3_ref,
                                o_ref, asm,
                                *, th, wo, sub, tiles_per_image, cup, cs):
    rows = th * wo
    g = _GUARD
    ctot = cup + cs
    cop = o_ref.shape[1]

    t = pl.program_id(0) % tiles_per_image      # tile index within its image
    above_ok = t > 0                            # halo row above exists inside this image
    below_ok = t < tiles_per_image - 1

    sc2 = sc2_ref[...]
    sh2 = sh2_ref[...]

    def s_act(v):   # batchnorm_2d(s) affine + the post-concat ReLU (f32 math, bf16 result)
        return jnp.maximum(v.astype(jnp.float32) * sc2 + sh2, 0.0).astype(jnp.bfloat16)

    def gate(v, ok):   # rows outside this image act as the conv's zero padding
        return jnp.where(ok, v, jnp.zeros_like(v))

    # ---- assemble the activated, concatenated, halo'd tile in ONE bf16 VMEM scratch ----
    zguard = jnp.zeros((g, ctot), jnp.bfloat16)
    asm[0:g, :] = zguard
    asm[g + 2 * wo + rows:2 * g + 2 * wo + rows, :] = zguard

    asm[g:g + wo, 0:cup] = gate(up_a_ref[...], above_ok)
    asm[g:g + wo, cup:ctot] = gate(s_act(s_a_ref[...]), above_ok)
    asm[g + wo:g + wo + rows, 0:cup] = up_c_ref[...]                 # already ReLU'd bf16
    asm[g + wo:g + wo + rows, cup:ctot] = s_act(s_c_ref[...])
    asm[g + wo + rows:g + 2 * wo + rows, 0:cup] = gate(up_b_ref[...], below_ok)
    asm[g + wo + rows:g + 2 * wo + rows, cup:ctot] = gate(s_act(s_b_ref[...]), below_ok)

    sc3 = sc3_ref[...]
    sh3 = sh3_ref[...]
    lane_zero = jnp.zeros((), jnp.bfloat16)
    col = lax.broadcasted_iota(jnp.int32, (sub, 1), 0)

    def chunk_body(c, carry):
        off0 = pl.multiple_of(c * sub, 8)              # first output row of this chunk
        wpos = (col + off0) % wo                       # position within the output image row
        has_left = wpos != 0
        has_right = wpos != wo - 1
        acc = jnp.zeros((sub, cop), jnp.float32)
        for dy in (-1, 0, 1):
            # one aligned extended window per dy; the 3 dx taps are derived from it
            ext_start = pl.multiple_of(off0 + (dy + 1) * wo, 8)
            ext = asm[pl.ds(ext_start, sub + 2 * g), :]
            w_l = jnp.where(has_left, ext[g - 1:g - 1 + sub, :], lane_zero)
            w_c = ext[g:g + sub, :]
            w_r = jnp.where(has_right, ext[g + 1:g + 1 + sub, :], lane_zero)
            tap = (dy + 1) * 3
            acc = acc + jnp.dot(w_l, w_ref[tap + 0], preferred_element_type=jnp.float32)
            acc = acc + jnp.dot(w_c, w_ref[tap + 1], preferred_element_type=jnp.float32)
            acc = acc + jnp.dot(w_r, w_ref[tap + 2], preferred_element_type=jnp.float32)
        z = jnp.maximum(acc, 0.0) * sc3 + sh3          # custom_conv_layer: conv -> ReLU -> BN
        o_ref[pl.ds(off0, sub), :] = z.astype(o_ref.dtype)
        return carry

    lax.fori_loop(0, rows // sub, chunk_body, 0)


def _cat_conv3x3_relu_bn(up2d, s2d, w2c, sc2, sh2, sc3, sh3, *, n, ho, wo, cop):
    cup = up2d.shape[1]
    cs = s2d.shape[1]
    ctot = cup + cs
    th = _pick_row_tile(ho, wo, n, max_rows=2048)
    rows = th * wo
    sub = _pick_sub(rows, cop, ctot)
    tiles_per_image = ho // th
    total_img_rows = n * ho

    kern = functools.partial(_cat_conv3x3_relu_bn_kernel, th=th, wo=wo, sub=sub,
                             tiles_per_image=tiles_per_image, cup=cup, cs=cs)

    def body_spec(c):
        return pl.BlockSpec((rows, c), lambda i: (i, 0))

    def above_spec(c):   # image row just above the tile (clamped; zeroed in-kernel at borders)
        return pl.BlockSpec((wo, c), lambda i: (jnp.maximum(i * th - 1, 0), 0))

    def below_spec(c):   # image row just below the tile (clamped; zeroed in-kernel at borders)
        return pl.BlockSpec((wo, c),
                            lambda i: (jnp.minimum(i * th + th, total_img_rows - 1), 0))

    return pl.pallas_call(
        kern,
        out_shape=jax.ShapeDtypeStruct((n * ho * wo, cop), jnp.bfloat16),
        grid=(n * tiles_per_image,),
        in_specs=[body_spec(cup), above_spec(cup), below_spec(cup),
                  body_spec(cs), above_spec(cs), below_spec(cs),
                  pl.BlockSpec((9, ctot, cop), lambda i: (0, 0, 0)),
                  pl.BlockSpec((1, cs), lambda i: (0, 0)),
                  pl.BlockSpec((1, cs), lambda i: (0, 0)),
                  pl.BlockSpec((1, cop), lambda i: (0, 0)),
                  pl.BlockSpec((1, cop), lambda i: (0, 0))],
        out_specs=pl.BlockSpec((rows, cop), lambda i: (i, 0)),
        scratch_shapes=[pltpu.VMEM((rows + 2 * wo + 2 * _GUARD, ctot), jnp.bfloat16)],
        compiler_params=pltpu.CompilerParams(
            dimension_semantics=("parallel",),
            vmem_limit_bytes=_vmem_limit_bytes()),
    )(up2d, up2d, up2d, s2d, s2d, s2d, w2c, sc2, sh2, sc3, sh3)


# ------------------------------------ module wrapper ------------------------------------ #

def unet_block_wide_forward(up_in, s_feat, params):
    """up_in: (N, up_in_c, H, W) f32 NCHW; s_feat (hook.feature): (N, (2H)*(2W), x_in_c) f32."""
    w1, w2 = params["w1"], params["w2"]
    scale1, shift1 = params["bn1_scale"], params["bn1_shift"]
    scale2, shift2 = params["bn2_scale"], params["bn2_shift"]
    scale3, shift3 = params["bn3_scale"], params["bn3_shift"]

    n, up_in_c, h, w = up_in.shape
    n_out = w2.shape[0]
    x_in_c = s_feat.shape[-1]
    ho, wo = 2 * h, 2 * w
    if s_feat.shape[1] != ho * wo:
        raise ValueError("hook feature spatial size mismatch")
    if w % 8 != 0:
        raise ValueError("W must be a multiple of 8 for the TPU kernels")

    n_out_p = _round_up(n_out, 64)     # per-subpixel (and kernel-2 "up") channel padding
    half = 2 * n_out_p                 # kernel-1 per-subpixel-row lane width (multiple of 128)
    cop = _round_up(n_out, 128) if n_out >= 64 else _round_up(n_out, 8)
    cup, cs = n_out_p, x_in_c

    # ---- conv1 weight permuted to PixelShuffle (i, j, c) column order, padded, bf16 ----
    w1_r = w1[:, :, 0, 0].reshape(n_out, 2, 2, up_in_c)            # (c, i, j, in)
    w1_r = jnp.transpose(w1_r, (1, 2, 0, 3))                       # (i, j, c, in)
    w1_r = jnp.pad(w1_r, ((0, 0), (0, 0), (0, n_out_p - n_out), (0, 0)))
    w1p = jnp.transpose(w1_r.reshape(4 * n_out_p, up_in_c), (1, 0)).astype(jnp.bfloat16)

    def perm_pad_bn1(v):
        vv = jnp.transpose(v.reshape(n_out, 2, 2), (1, 2, 0))
        vv = jnp.pad(vv, ((0, 0), (0, 0), (0, n_out_p - n_out)))
        return vv.reshape(1, 4 * n_out_p)

    sc1 = perm_pad_bn1(scale1)
    sh1 = perm_pad_bn1(shift1)

    # ---- conv2 weights: per-tap, [up | s] input channels merged into one K ----
    wt = jnp.transpose(w2, (2, 3, 1, 0)).reshape(9, n_out + x_in_c, n_out)
    w_up = jnp.pad(wt[:, :n_out, :], ((0, 0), (0, cup - n_out), (0, cop - n_out)))
    w_s = jnp.pad(wt[:, n_out:, :], ((0, 0), (0, 0), (0, cop - n_out)))
    w2c = jnp.concatenate([w_up, w_s], axis=1).astype(jnp.bfloat16)     # (9, cup+cs, cop)
    sc2 = scale2.reshape(1, cs)
    sh2 = shift2.reshape(1, cs)
    sc3 = jnp.pad(scale3, (0, cop - n_out)).reshape(1, cop)
    sh3 = jnp.pad(shift3, (0, cop - n_out)).reshape(1, cop)

    # ---- stage 1: 1x1 conv + BN + ReLU + PixelShuffle(2), fused (bf16 cast fused into transpose) ----
    x1 = jnp.transpose(up_in, (0, 2, 3, 1)).reshape(n * h * w, up_in_c).astype(jnp.bfloat16)
    out1 = _conv1x1_bn_relu_shuffle(x1, w1p, sc1, sh1, n=n, h=h, w=w, half=half)
    up2d = out1.reshape(n * ho * wo, n_out_p)       # free reshape: already pixel-shuffled NHWC

    # ---- stage 2: fused [BN_s + concat + ReLU] -> 3x3 conv -> ReLU -> BN, one kernel ----
    # TODO(synk): s_feat is kept f32 (a wrapper-side bf16 cast adds a full read+write pass that
    #             outweighs the ~1.25x halo-amplified read savings); BN_s math stays f32 in-kernel.
    s2d = s_feat.reshape(n * ho * wo, x_in_c)
    z = _cat_conv3x3_relu_bn(up2d, s2d, w2c, sc2, sh2, sc3, sh3, n=n, ho=ho, wo=wo, cop=cop)
    z = z.reshape(n, ho, wo, cop)[:, :, :, :n_out]
    return jnp.transpose(z, (0, 3, 1, 2)).astype(jnp.float32)       # NHWC -> NCHW, f32 out


# --------------------------------- deterministic params --------------------------------- #

def make_params(key, up_in_c, x_in_c, n_out):
    # Kaiming-normal init + exact spectral normalization (folds nn.utils.spectral_norm into
    # the stored weight).  ICNR structure is an init-only detail and is not reproduced.
    def kaiming(k, shape):
        fan_in = shape[1] * shape[2] * shape[3]
        return jax.random.normal(k, shape, jnp.float32) * math.sqrt(2.0 / fan_in)

    def spectral_normalize(wt):
        sigma = jnp.linalg.svd(wt.reshape(wt.shape[0], -1), compute_uv=False)[0]
        return wt / sigma

    k1, k2 = jax.random.split(key)
    ni = n_out + x_in_c
    w1 = spectral_normalize(kaiming(k1, (4 * n_out, up_in_c, 1, 1)))
    w2 = spectral_normalize(kaiming(k2, (n_out, ni, 3, 3)))

    inv = 1.0 / math.sqrt(1.0 + BN_EPS)   # eval-mode BN: running_mean=0, running_var=1
    return dict(
        w1=w1, w2=w2,
        bn1_scale=jnp.full((4 * n_out,), inv, jnp.float32),   # BatchNorm2d default (w=1, b=0)
        bn1_shift=jnp.zeros((4 * n_out,), jnp.float32),
        bn2_scale=jnp.full((x_in_c,), inv, jnp.float32),      # batchnorm_2d: weight=1
        bn2_shift=jnp.full((x_in_c,), 1e-3, jnp.float32),     # batchnorm_2d: bias=0.001
        bn3_scale=jnp.full((n_out,), inv, jnp.float32),
        bn3_shift=jnp.zeros((n_out,), jnp.float32),
    )


# ------------------------------------ pure-JAX reference --------------------------------- #

def reference_forward(up_in, s_feat, params):
    w1, w2 = params["w1"], params["w2"]
    scale1, shift1 = params["bn1_scale"], params["bn1_shift"]
    scale2, shift2 = params["bn2_scale"], params["bn2_shift"]
    scale3, shift3 = params["bn3_scale"], params["bn3_shift"]
    n, _, h, w = up_in.shape
    y = lax.conv_general_dilated(up_in, w1, (1, 1), "VALID",
                                 dimension_numbers=("NCHW", "OIHW", "NCHW"),
                                 precision=lax.Precision.HIGHEST)
    y = y * scale1[None, :, None, None] + shift1[None, :, None, None]
    y = jnp.maximum(y, 0.0)
    n_out = y.shape[1] // 4
    y = y.reshape(n, n_out, 2, 2, h, w)
    y = jnp.transpose(y, (0, 1, 4, 2, 5, 3)).reshape(n, n_out, 2 * h, 2 * w)
    x_in_c = s_feat.shape[-1]
    s = jnp.transpose(s_feat.reshape(n, 2 * h, 2 * w, x_in_c), (0, 3, 1, 2))
    s = s * scale2[None, :, None, None] + shift2[None, :, None, None]
    cat = jnp.maximum(jnp.concatenate([y, s], axis=1), 0.0)
    z = lax.conv_general_dilated(cat, w2, (1, 1), ((1, 1), (1, 1)),
                                 dimension_numbers=("NCHW", "OIHW", "NCHW"),
                                 precision=lax.Precision.HIGHEST)
    z = jnp.maximum(z, 0.0)
    z = z * scale3[None, :, None, None] + shift3[None, :, None, None]
    return z


if __name__ == "__main__":
    key = jax.random.PRNGKey(0)
    configs = [
        # (N, up_in_c, x_in_c, n_out, H, W)
        (2, 8, 12, 8, 32, 32),    # tiny channels: single-chunk path, narrow masked output store
        (2, 8, 12, 72, 32, 32),   # wider output: lane-dense cop=128, multi-chunk accumulation
    ]
    for (N, up_in_c, x_in_c, n_out, H, W) in configs:
        kp, ku, ks, key = jax.random.split(key, 4)
        params = make_params(kp, up_in_c, x_in_c, n_out)
        up_in = jax.random.normal(ku, (N, up_in_c, H, W), jnp.float32)
        s_feat = jax.random.normal(ks, (N, (2 * H) * (2 * W), x_in_c), jnp.float32)  # hook.feature

        out = jax.block_until_ready(unet_block_wide_forward(up_in, s_feat, params))
        ref = jax.block_until_ready(reference_forward(up_in, s_feat, params))

        assert out.shape == (N, n_out, 2 * H, 2 * W), out.shape
        # tolerance accounts for bf16 MXU operands / bf16 stores (accumulation + epilogues in f32)
        np.testing.assert_allclose(np.asarray(out), np.asarray(ref), rtol=5e-2, atol=5e-2)
    print("KERNEL_OK")
</pallas_src>

<mosaic_0001>
module attributes {stable_mosaic.version = 11 : i64} {
  func.func @_conv1x1_bn_relu_shuffle_kernel(%arg0: i32, %arg1: memref<256x8xbf16, #tpu.memory_space<vmem>>, %arg2: memref<8x256xbf16, #tpu.memory_space<vmem>>, %arg3: memref<1x256xf32, #tpu.memory_space<vmem>>, %arg4: memref<1x256xf32, #tpu.memory_space<vmem>>, %arg5: memref<8x2x32x128xbf16, #tpu.memory_space<vmem>>) attributes {dimension_semantics = [#tpu.dimension_semantics<parallel>], iteration_bounds = array<i64: 8>, scalar_prefetch = 0 : i64, scratch_operands = 0 : i64, tpu.core_type = #tpu.core_type<tc>, window_params = [{transform_indices = @transform_0, window_bounds = array<i64: 256, 8>}, {pipeline_mode = #tpu.pipeline_mode<synchronous>, transform_indices = @transform_1, window_bounds = array<i64: 8, 256>}, {pipeline_mode = #tpu.pipeline_mode<synchronous>, transform_indices = @transform_2, window_bounds = array<i64: 1, 256>}, {pipeline_mode = #tpu.pipeline_mode<synchronous>, transform_indices = @transform_3, window_bounds = array<i64: 1, 256>}, {transform_indices = @transform_4, window_bounds = array<i64: 8, 2, 32, 128>}]} {
    %c0 = arith.constant 0 : index
    %c0_0 = arith.constant 0 : index
    %0 = vector.load %arg1[%c0, %c0_0] : memref<256x8xbf16, #tpu.memory_space<vmem>>, vector<256x8xbf16>
    %c0_1 = arith.constant 0 : index
    %c0_2 = arith.constant 0 : index
    %1 = vector.load %arg2[%c0_1, %c0_2] : memref<8x256xbf16, #tpu.memory_space<vmem>>, vector<8x256xbf16>
    %cst = arith.constant dense<0.000000e+00> : vector<256x256xf32>
    %2 = tpu.matmul %0, %1, %cst {dimension_numbers = #tpu.dot_dimension_numbers<[1], [0], [0], [1], [0, 0, 1, 1], [], []>} : vector<256x8xbf16>, vector<8x256xbf16>, vector<256x256xf32> -> vector<256x256xf32>
    %c0_3 = arith.constant 0 : index
    %c0_4 = arith.constant 0 : index
    %3 = vector.load %arg3[%c0_3, %c0_4] : memref<1x256xf32, #tpu.memory_space<vmem>>, vector<1x256xf32>
    %4 = vector.broadcast %3 : vector<1x256xf32> to vector<256x256xf32>
    %5 = arith.mulf %2, %4 : vector<256x256xf32>
    %c0_5 = arith.constant 0 : index
    %c0_6 = arith.constant 0 : index
    %6 = vector.load %arg4[%c0_5, %c0_6] : memref<1x256xf32, #tpu.memory_space<vmem>>, vector<1x256xf32>
    %7 = vector.broadcast %6 : vector<1x256xf32> to vector<256x256xf32>
    %8 = arith.addf %5, %7 : vector<256x256xf32>
    %cst_7 = arith.constant 0.000000e+00 : f32
    %9 = vector.broadcast %cst_7 : f32 to vector<256x256xf32>
    %10 = arith.maximumf %8, %9 : vector<256x256xf32>
    %11 = vector.extract_strided_slice %10 {offsets = [0, 0], sizes = [256, 128], strides = [1, 1]} : vector<256x256xf32> to vector<256x128xf32>
    %12 = vector.shape_cast %11 : vector<256x128xf32> to vector<8x32x128xf32>
    %13 = arith.truncf %12 : vector<8x32x128xf32> to vector<8x32x128xbf16>
    %c0_8 = arith.constant 0 : index
    %c0_9 = arith.constant 0 : index
    %c0_10 = arith.constant 0 : index
    %c0_11 = arith.constant 0 : index
    %14 = vector.load %arg5[%c0_8, %c0_9, %c0_10, %c0_11] : memref<8x2x32x128xbf16, #tpu.memory_space<vmem>>, vector<8x1x32x128xbf16>
    %15 = vector.shape_cast %14 : vector<8x1x32x128xbf16> to vector<8x32x128xbf16>
    %16 = vector.shape_cast %13 : vector<8x32x128xbf16> to vector<8x1x32x128xbf16>
    tpu.vector_store %arg5[%c0_8, %c0_9, %c0_10, %c0_11], %16 {strides = array<i32>} : memref<8x2x32x128xbf16, #tpu.memory_space<vmem>>, vector<8x1x32x128xbf16>,
    %17 = vector.extract_strided_slice %10 {offsets = [0, 128], sizes = [256, 128], strides = [1, 1]} : vector<256x256xf32> to vector<256x128xf32>
    %18 = vector.shape_cast %17 : vector<256x128xf32> to vector<8x32x128xf32>
    %19 = arith.truncf %18 : vector<8x32x128xf32> to vector<8x32x128xbf16>
    %c0_12 = arith.constant 0 : index
    %c1 = arith.constant 1 : index
    %c0_13 = arith.constant 0 : index
    %c0_14 = arith.constant 0 : index
    %20 = vector.load %arg5[%c0_12, %c1, %c0_13, %c0_14] : memref<8x2x32x128xbf16, #tpu.memory_space<vmem>>, vector<8x1x32x128xbf16>
    %21 = vector.shape_cast %20 : vector<8x1x32x128xbf16> to vector<8x32x128xbf16>
    %22 = vector.shape_cast %19 : vector<8x32x128xbf16> to vector<8x1x32x128xbf16>
    tpu.vector_store %arg5[%c0_12, %c1, %c0_13, %c0_14], %22 {strides = array<i32>} : memref<8x2x32x128xbf16, #tpu.memory_space<vmem>>, vector<8x1x32x128xbf16>,
    return
  }
  func.func @transform_0(%arg0: i32) -> (i32, i32) {
    %c0_i32 = arith.constant 0 : i32
    %c0_i32_0 = arith.constant 0 : i32
    return %arg0, %c0_i32 : i32, i32
  }
  func.func @transform_1(%arg0: i32) -> (i32, i32) {
    %c0_i32 = arith.constant 0 : i32
    %c0_i32_0 = arith.constant 0 : i32
    %c0_i32_1 = arith.constant 0 : i32
    return %c0_i32, %c0_i32_0 : i32, i32
  }
  func.func @transform_2(%arg0: i32) -> (i32, i32) {
    %c0_i32 = arith.constant 0 : i32
    %c0_i32_0 = arith.constant 0 : i32
    %c0_i32_1 = arith.constant 0 : i32
    return %c0_i32, %c0_i32_0 : i32, i32
  }
  func.func @transform_3(%arg0: i32) -> (i32, i32) {
    %c0_i32 = arith.constant 0 : i32
    %c0_i32_0 = arith.constant 0 : i32
    %c0_i32_1 = arith.constant 0 : i32
    return %c0_i32, %c0_i32_0 : i32, i32
  }
  func.func @transform_4(%arg0: i32) -> (i32, i32, i32, i32) {
    %c0_i32 = arith.constant 0 : i32
    %c0_i32_0 = arith.constant 0 : i32
    %c0_i32_1 = arith.constant 0 : i32
    %c0_i32_2 = arith.constant 0 : i32
    return %arg0, %c0_i32, %c0_i32_0, %c0_i32_1 : i32, i32, i32, i32
  }
}

</mosaic_0001>

<llo_original>
// kernel: tpu_custom_call.1
$region0: #{tpu_custom_call.1}
  #allocation0 [shape = 'u32[]', space=smem, size = 0x4, offset = 0x4, fixed_abs, tag = 'smem constant byte address 0x4 - core index']
  #allocation1 [shape = 'u32[144,128]{1,0:T(1,128)}', space=vmem, size = 0x12000, scoped, tag = 'internal scratch']
  %s0 = inlined_call_operand.vmem [shape: bf16[2048,8], index: 0, kind: input, shape index: {}]
  %s1 = inlined_call_operand.vmem [shape: bf16[8,256], index: 1, kind: input, shape index: {}]
  %s2 = inlined_call_operand.vmem [shape: f32[1,256], index: 2, kind: input, shape index: {}]
  %s3 = inlined_call_operand.vmem [shape: f32[1,256], index: 3, kind: input, shape index: {}]
  %s4 = inlined_call_operand.hbm [shape: bf16[64,2,32,128], index: 4, kind: output, shape index: {}]
  %s5 = sld [smem:[#allocation0]]
  $region49: #{tpu_custom_call.1} parent=0
    _
  %s7 = ssub.s32 1, %s5
  %s8 = scalar_select 0, %s7, %s5
  $region1: #{tpu_custom_call.1} parent=0
    #allocation2 [shape = 'u8[262144]{0}', space=vmem, size = 0x40000, scoped, tag = 'output window, operand 0']
    #allocation3 [shape = 's32[2]{0}', space=sflag, size = 0x8, scoped, tag = 'scoped memory for tpu_custom_call.1']
    %9 = vsyncpa [#allocation3], 0
    %s10 = scalar_lea.sflag [#allocation3], 1
    %11 = vsyncpa %s10, 0
    loop: start=0, step=1, limit=10
    $region2: #{tpu_custom_call.1} parent=1 // loop_pre_header
      _
    $region3: #{tpu_custom_call.1} parent=1 // loop_header
      %s13 = sphi 0, %s17
      %p14 = scmp.ge.s32.totalorder %s13, 10
      %s23 = sphi 0, %s25
      %s26 = sphi 0, %s23
      %s27 = sphi 0, %s26
      %s43 = sphi 0, %s27
      %s47 = sphi 0, %s47
      %s49 = sphi 0, %s47
      %s50 = sphi 0, %s49
      %s64 = sphi 0, %s50
      %s68 = sphi 0, %s68
      %s70 = sphi 0, %s68
      %s71 = sphi 0, %s70
      %s85 = sphi 0, %s71
      %s89 = sphi 0, %s89
      %s91 = sphi 0, %s89
      %s92 = sphi 0, %s91
      %s106 = sphi 0, %s92
      %s112 = sphi 0, %s114
      %s115 = sphi 0, %s112
      %s116 = sphi 0, %s115
      %s132 = sphi 0, %s116
    $region4: #{tpu_custom_call.1} parent=1 // loop_header_branch
      %16 = sbr.rel (%p14) target = $region8
    $region5: #{tpu_custom_call.1} parent=1 // loop_body
      %s18 = ssub.s32 %s13, 1
      %s19 = ssub.s32 %s13, 2
      %s20 = sadd.s32 %s13, 1
      %s21 = ssub.s32 %s13, %s20
      %p22 = scmp.eq.s32.totalorder %s21, 0
      %s24 = sadd.s32 %s23, 1
      %s25 = scalar_select %p22, %s23, %s24
      %p28 = pneg %p22
      %p29 = scmp.eq.s32.totalorder %s13, 7
      %p30 = por %p28, %p29
      %p31 = scmp.ne.s32.totalorder %s23, %s26
      %p32 = scmp.eq.s32.totalorder %s13, 0
      %p33 = por %p31, %p32
      %p34 = scmp.ne.s32.totalorder %s23, %s26
      %p35 = scmp.eq.s32.totalorder %s18, 7
      %p36 = por %p34, %p35
      %p37 = scmp.ne.s32.totalorder %s26, %s27
      %p38 = scmp.eq.s32.totalorder %s18, 0
      %p39 = por %p37, %p38
      %p40 = scmp.ne.s32.totalorder %s26, %s27
      %p41 = scmp.eq.s32.totalorder %s19, 7
      %p42 = por %p40, %p41
      %p44 = scmp.ne.s32.totalorder %s27, %s43
      %p45 = scmp.eq.s32.totalorder %s19, 0
      %p46 = por %p44, %p45
      %s48 = sadd.s32 %s47, 1
      %p51 = scmp.eq.s32.totalorder %s13, 7
      %p52 = scmp.ne.s32.totalorder %s47, %s49
      %p53 = scmp.eq.s32.totalorder %s13, 0
      %p54 = por %p52, %p53
      %p55 = scmp.ne.s32.totalorder %s47, %s49
      %p56 = scmp.eq.s32.totalorder %s18, 7
      %p57 = por %p55, %p56
      %p58 = scmp.ne.s32.totalorder %s49, %s50
      %p59 = scmp.eq.s32.totalorder %s18, 0
      %p60 = por %p58, %p59
      %p61 = scmp.ne.s32.totalorder %s49, %s50
      %p62 = scmp.eq.s32.totalorder %s19, 7
      %p63 = por %p61, %p62
      %p65 = scmp.ne.s32.totalorder %s50, %s64
      %p66 = scmp.eq.s32.totalorder %s19, 0
      %p67 = por %p65, %p66
      %s69 = sadd.s32 %s68, 1
      %p72 = scmp.eq.s32.totalorder %s13, 7
      %p73 = scmp.ne.s32.totalorder %s68, %s70
      %p74 = scmp.eq.s32.totalorder %s13, 0
      %p75 = por %p73, %p74
      %p76 = scmp.ne.s32.totalorder %s68, %s70
      %p77 = scmp.eq.s32.totalorder %s18, 7
      %p78 = por %p76, %p77
      %p79 = scmp.ne.s32.totalorder %s70, %s71
      %p80 = scmp.eq.s32.totalorder %s18, 0
      %p81 = por %p79, %p80
      %p82 = scmp.ne.s32.totalorder %s70, %s71
      %p83 = scmp.eq.s32.totalorder %s19, 7
      %p84 = por %p82, %p83
      %p86 = scmp.ne.s32.totalorder %s71, %s85
      %p87 = scmp.eq.s32.totalorder %s19, 0
      %p88 = por %p86, %p87
      %s90 = sadd.s32 %s89, 1
      %p93 = scmp.eq.s32.totalorder %s13, 7
      %p94 = scmp.ne.s32.totalorder %s89, %s91
      %p95 = scmp.eq.s32.totalorder %s13, 0
      %p96 = por %p94, %p95
      %p97 = scmp.ne.s32.totalorder %s89, %s91
      %p98 = scmp.eq.s32.totalorder %s18, 7
      %p99 = por %p97, %p98
      %p100 = scmp.ne.s32.totalorder %s91, %s92
      %p101 = scmp.eq.s32.totalorder %s18, 0
      %p102 = por %p100, %p101
      %p103 = scmp.ne.s32.totalorder %s91, %s92
      %p104 = scmp.eq.s32.totalorder %s19, 7
      %p105 = por %p103, %p104
      %p107 = scmp.ne.s32.totalorder %s92, %s106
      %p108 = scmp.eq.s32.totalorder %s19, 0
      %p109 = por %p107, %p108
      %s110 = ssub.s32 %s13, %s20
      %p111 = scmp.eq.s32.totalorder %s110, 0
      %s113 = sadd.s32 %s112, 1
      %s114 = scalar_select %p111, %s112, %s113
      %p117 = pneg %p111
      %p118 = scmp.eq.s32.totalorder %s13, 7
      %p119 = por %p117, %p118
      %p120 = scmp.ne.s32.totalorder %s112, %s115
      %p121 = scmp.eq.s32.totalorder %s13, 0
      %p122 = por %p120, %p121
      %p123 = scmp.ne.s32.totalorder %s112, %s115
      %p124 = scmp.eq.s32.totalorder %s18, 7
      %p125 = por %p123, %p124
      %p126 = scmp.ne.s32.totalorder %s115, %s116
      %p127 = scmp.eq.s32.totalorder %s18, 0
      %p128 = por %p126, %p127
      %p129 = scmp.ne.s32.totalorder %s115, %s116
      %p130 = scmp.eq.s32.totalorder %s19, 7
      %p131 = por %p129, %p130
      %p133 = scmp.ne.s32.totalorder %s116, %s132
      %p134 = scmp.eq.s32.totalorder %s19, 0
      %p135 = por %p133, %p134
      %p136 = scmp.le.s32.totalorder 1, %s13
      %p137 = scmp.lt.s32.totalorder %s13, 9
      %p138 = pnand %p136, %p137
      %p139 = pneg %p138
      // Predicated region
      $region9: #{tpu_custom_call.1} parent=5 // pred_check
        _
      $region10: #{tpu_custom_call.1} parent=5 // pred_check_branch
        %141 = sbr.rel (%p138) target = $region12
      $region11: #{tpu_custom_call.1} parent=5 // pred_region
        %s142 = ssub.s32 %s13, 1
        // Predicated region
        $region13: #{tpu_custom_call.1} parent=11 // pred_check
          %p143 = pneg %p60
        $region14: #{tpu_custom_call.1} parent=11 // pred_check_branch
          %145 = sbr.rel (%p143) target = $region16
        $region15: #{tpu_custom_call.1} parent=11 // pred_region
          _
        $region16: #{tpu_custom_call.1} parent=11 // pred_fallthru
          _
        // Predicated region
        $region17: #{tpu_custom_call.1} parent=11 // pred_check
          %p146 = pneg %p81
        $region18: #{tpu_custom_call.1} parent=11 // pred_check_branch
          %148 = sbr.rel (%p146) target = $region20
        $region19: #{tpu_custom_call.1} parent=11 // pred_region
          _
        $region20: #{tpu_custom_call.1} parent=11 // pred_fallthru
          _
        // Predicated region
        $region21: #{tpu_custom_call.1} parent=11 // pred_check
          %p149 = pneg %p102
        $region22: #{tpu_custom_call.1} parent=11 // pred_check_branch
          %151 = sbr.rel (%p149) target = $region24
        $region23: #{tpu_custom_call.1} parent=11 // pred_region
          _
        $region24: #{tpu_custom_call.1} parent=11 // pred_fallthru
          _
      $region12: #{tpu_custom_call.1} parent=5 // pred_fallthru
        _
      %p152 = scmp.lt.s32.totalorder %s13, 8
      // Predicated region
      $region25: #{tpu_custom_call.1} parent=5 // pred_check
        %p153 = pneg %p152
      $region26: #{tpu_custom_call.1} parent=5 // pred_check_branch
        %155 = sbr.rel (%p153) target = $region28
      $region27: #{tpu_custom_call.1} parent=5 // pred_region
        // Predicated region
        $region29: #{tpu_custom_call.1} parent=27 // pred_check
          %p156 = pneg %p33
        $region30: #{tpu_custom_call.1} parent=27 // pred_check_branch
          %158 = sbr.rel (%p156) target = $region32
        $region31: #{tpu_custom_call.1} parent=27 // pred_region
          %s159 = smul.u32 32, %s13
          %p160 = scmp.lt.s32.totalorder %s159, 255
          %s161 = scalar_select %p160, %s159, 255
          %s162 = smul.addr %s161, 4
          %s163 = scalar_lea.vmem %s0, %s162
          %s164 = smul.u32 32, %s13
        $region32: #{tpu_custom_call.1} parent=27 // pred_fallthru
          _
      $region28: #{tpu_custom_call.1} parent=5 // pred_fallthru
        _
      %p165 = scmp.le.s32.totalorder 1, %s13
      %p166 = scmp.lt.s32.totalorder %s13, 9
      %p167 = pnand %p165, %p166
      %p168 = pneg %p167
      // Predicated region
      $region33: #{tpu_custom_call.1} parent=5 // pred_check
        _
      $region34: #{tpu_custom_call.1} parent=5 // pred_check_branch
        %170 = sbr.rel (%p167) target = $region36
      $region35: #{tpu_custom_call.1} parent=5 // pred_region
        %s171 = ssub.s32 %s13, 1
        %s172 = smul.u32 32, %s18
        %p173 = scmp.lt.s32.totalorder %s172, 255
        %s174 = scalar_select %p173, %s172, 255
        %s175 = smul.addr %s174, 4
        %s176 = scalar_lea.vmem %s0, %s175
        %p177 = pneg %p39
        %p178 = pneg %p36
        %p179 = pneg %p60
        %p180 = pneg %p57
        %p181 = pneg %p81
        %p182 = pneg %p78
        %p183 = pneg %p102
        %p184 = pneg %p99
        %p185 = pneg %p128
        %p186 = pneg %p125
        %s187 = sand.u32 %s115, 1
        %s188 = scalar_lea.sflag [#allocation3], %s187
        %s189 = sand.u32 %s115, 1
        %s190 = smul.addr %s189, 256
        %s191 = scalar_lea.vmem [#allocation2], %s190
        %s192 = smul.u32 32, %s18
        %p193 = scmp.lt.s32.totalorder %s192, 255
        %s194 = scalar_select %p193, %s192, 255
        %s195 = smul.addr %s194, 4
        %s196 = scalar_lea.vmem %s0, %s195
        %s197 = smul.u32 32, %s18
        %s198 = smul.u32 8, %s18
        %v200 = vld [vmem:[%s196] sm:$0xf]
        %v201 = vld [vmem:[%s196 + $0x4] sm:$0xf]
        %v202 = vld [vmem:[%s196 + $0x8] sm:$0xf]
        %v203 = vld [vmem:[%s196 + $0xc] sm:$0xf]
        %v204 = vld [vmem:[%s196 + $0x10] sm:$0xf]
        %v205 = vld [vmem:[%s196 + $0x14] sm:$0xf]
        %v206 = vld [vmem:[%s196 + $0x18] sm:$0xf]
        %v207 = vld [vmem:[%s196 + $0x1c] sm:$0xf]
        %v208 = vld [vmem:[%s196 + $0x20] sm:$0xf]
        %v209 = vld [vmem:[%s196 + $0x24] sm:$0xf]
        %v210 = vld [vmem:[%s196 + $0x28] sm:$0xf]
        %v211 = vld [vmem:[%s196 + $0x2c] sm:$0xf]
        %v212 = vld [vmem:[%s196 + $0x30] sm:$0xf]
        %v213 = vld [vmem:[%s196 + $0x34] sm:$0xf]
        %v214 = vld [vmem:[%s196 + $0x38] sm:$0xf]
        %v215 = vld [vmem:[%s196 + $0x3c] sm:$0xf]
        %v216 = vld [vmem:[%s196 + $0x40] sm:$0xf]
        %v217 = vld [vmem:[%s196 + $0x44] sm:$0xf]
        %v218 = vld [vmem:[%s196 + $0x48] sm:$0xf]
        %v219 = vld [vmem:[%s196 + $0x4c] sm:$0xf]
        %v220 = vld [vmem:[%s196 + $0x50] sm:$0xf]
        %v221 = vld [vmem:[%s196 + $0x54] sm:$0xf]
        %v222 = vld [vmem:[%s196 + $0x58] sm:$0xf]
        %v223 = vld [vmem:[%s196 + $0x5c] sm:$0xf]
        %v224 = vld [vmem:[%s196 + $0x60] sm:$0xf]
        %v225 = vld [vmem:[%s196 + $0x64] sm:$0xf]
        %v226 = vld [vmem:[%s196 + $0x68] sm:$0xf]
        %v227 = vld [vmem:[%s196 + $0x6c] sm:$0xf]
        %v228 = vld [vmem:[%s196 + $0x70] sm:$0xf]
        %v229 = vld [vmem:[%s196 + $0x74] sm:$0xf]
        %v230 = vld [vmem:[%s196 + $0x78] sm:$0xf]
        %v231 = vld [vmem:[%s196 + $0x7c] sm:$0xf]
        %v232 = vld [vmem:[%s1] sm:$0xff]
        %v265 = vunpack.c.l.b16 %v200
        %v266 = vunpack.c.l.b16 %v201
        %v267 = vunpack.c.l.b16 %v202
        %v268 = vunpack.c.l.b16 %v203
        %v269 = vunpack.c.l.b16 %v204
        %v270 = vunpack.c.l.b16 %v205
        %v271 = vunpack.c.l.b16 %v206
        %v272 = vunpack.c.l.b16 %v207
        %v273 = vunpack.c.l.b16 %v208
        %v274 = vunpack.c.l.b16 %v209
        %v275 = vunpack.c.l.b16 %v210
        %v276 = vunpack.c.l.b16 %v211
        %v277 = vunpack.c.l.b16 %v212
        %v278 = vunpack.c.l.b16 %v213
        %v279 = vunpack.c.l.b16 %v214
        %v280 = vunpack.c.l.b16 %v215
        %v281 = vunpack.c.l.b16 %v216
        %v282 = vunpack.c.l.b16 %v217
        %v283 = vunpack.c.l.b16 %v218
        %v284 = vunpack.c.l.b16 %v219
        %v285 = vunpack.c.l.b16 %v220
        %v286 = vunpack.c.l.b16 %v221
        %v287 = vunpack.c.l.b16 %v222
        %v288 = vunpack.c.l.b16 %v223
        %v289 = vunpack.c.l.b16 %v224
        %v290 = vunpack.c.l.b16 %v225
        %v291 = vunpack.c.l.b16 %v226
        %v292 = vunpack.c.l.b16 %v227
        %v293 = vunpack.c.l.b16 %v228
        %v294 = vunpack.c.l.b16 %v229
        %v295 = vunpack.c.l.b16 %v230
        %v296 = vunpack.c.l.b16 %v231
        %v297 = vpack.c.b16 %v266, %v265
        %v298 = vpack.c.b16 %v268, %v267
        %v299 = vpack.c.b16 %v270, %v269
        %v300 = vpack.c.b16 %v272, %v271
        %v301 = vpack.c.b16 %v274, %v273
        %v302 = vpack.c.b16 %v276, %v275
        %v303 = vpack.c.b16 %v278, %v277
        %v304 = vpack.c.b16 %v280, %v279
        %v305 = vpack.c.b16 %v282, %v281
        %v306 = vpack.c.b16 %v284, %v283
        %v307 = vpack.c.b16 %v286, %v285
        %v308 = vpack.c.b16 %v288, %v287
        %v309 = vpack.c.b16 %v290, %v289
        %v310 = vpack.c.b16 %v292, %v291
        %v311 = vpack.c.b16 %v294, %v293
        %v312 = vpack.c.b16 %v296, %v295
        %v314 = vunpack.c.l.b16 %v232
        %v315 = vunpack.c.h.b16 %v232
        %v316 = vpack.c.b16 %v314, %v314
        %v317 = vpack.c.b16 %v315, %v315
        %vm318 = vcmask 64512
        %v320 = vsel %vm318, %v297, 0
        %v323 = vsel %vm318, %v298, 0
        %v326 = vsel %vm318, %v299, 0
        %v329 = vsel %vm318, %v300, 0
        %v332 = vsel %vm318, %v301, 0
        %v335 = vsel %vm318, %v302, 0
        %v338 = vsel %vm318, %v303, 0
        %v341 = vsel %vm318, %v304, 0
        %v344 = vsel %vm318, %v305, 0
        %v347 = vsel %vm318, %v306, 0
        %v350 = vsel %vm318, %v307, 0
        %v353 = vsel %vm318, %v308, 0
        %v356 = vsel %vm318, %v309, 0
        %v359 = vsel %vm318, %v310, 0
        %v362 = vsel %vm318, %v311, 0
        %v365 = vsel %vm318, %v312, 0
        %vm367 = vcmask 1043456
        %v369 = vsel %vm367, %v316, 0
        %v372 = vsel %vm367, %v317, 0
        %374 = vmatprep.subr.bf16.mxu0 %v372
        %375 = vmatpush1.bf16.msra.mxu0 %v369
        %376 = vmatprep.subr.bf16.mxu0 0
        %377 = vmatpush1.bf16.msra.mxu0 0
        %378 = vmatprep.subr.bf16.mxu0 0
        %379 = vmatpush1.bf16.msra.mxu0 0
        %380 = vmatprep.subr.bf16.mxu0 0
        %381 = vmatpush1.bf16.msra.mxu0 0
        %382 = vmatprep.subr.bf16.mxu0 0
        %383 = vmatpush1.bf16.msra.mxu0 0
        %384 = vmatprep.subr.bf16.mxu0 0
        %385 = vmatpush1.bf16.msra.mxu0 0
        %386 = vmatprep.subr.bf16.mxu0 0
        %387 = vmatpush1.bf16.msra.mxu0 0
        %388 = vmatprep.subr.bf16.mxu0 0
        %389 = vmatpush1.bf16.msra.mxu0 0
        %390 = vmatprep.subr.bf16.mxu0 0
        %391 = vmatpush1.bf16.msra.mxu0 0
        %392 = vmatprep.subr.bf16.mxu0 0
        %393 = vmatpush1.bf16.msra.mxu0 0
        %394 = vmatprep.subr.bf16.mxu0 0
        %395 = vmatpush1.bf16.msra.mxu0 0
        %396 = vmatprep.subr.bf16.mxu0 0
        %397 = vmatpush1.bf16.msra.mxu0 0
        %398 = vmatprep.subr.bf16.mxu0 0
        %399 = vmatpush1.bf16.msra.mxu0 0
        %400 = vmatprep.subr.bf16.mxu0 0
        %401 = vmatpush1.bf16.msra.mxu0 0
        %402 = vmatprep.subr.bf16.mxu0 0
        %403 = vmatpush1.bf16.msra.mxu0 0
        %404 = vmatprep.subr.bf16.mxu0 0
        %405 = vmatpush1.bf16.msra.mxu0 0
        %406 = vmatprep.mubr.bf16.mxu0 0
        %407 = vmatmul.mubr.bf16.gmra.mrb[0].mxu0 %v320
        %v408 = vpop.f32.mrb[0].mxu0
        %v409 = vadd.f32 0.0, %v408
        %v410 = vpop.f32.mrb[0].mxu0
        %v411 = vadd.f32 0.0, %v410
        %v412 = vpop.f32.mrb[0].mxu0
        %v413 = vadd.f32 0.0, %v412
        %v414 = vpop.f32.mrb[0].mxu0
        %v415 = vadd.f32 0.0, %v414
        %416 = vmatprep.mubr.bf16.mxu0 0
        %417 = vmatmul.mubr.bf16.gmra.mrb[0].mxu0 %v323
        %v418 = vpop.f32.mrb[0].mxu0
        %v419 = vadd.f32 0.0, %v418
        %v420 = vpop.f32.mrb[0].mxu0
        %v421 = vadd.f32 0.0, %v420
        %v422 = vpop.f32.mrb[0].mxu0
        %v423 = vadd.f32 0.0, %v422
        %v424 = vpop.f32.mrb[0].mxu0
        %v425 = vadd.f32 0.0, %v424
        %426 = vmatprep.mubr.bf16.mxu0 0
        %427 = vmatmul.mubr.bf16.gmra.mrb[0].mxu0 %v326
        %v428 = vpop.f32.mrb[0].mxu0
        %v429 = vadd.f32 0.0, %v428
        %v430 = vpop.f32.mrb[0].mxu0
        %v431 = vadd.f32 0.0, %v430
        %v432 = vpop.f32.mrb[0].mxu0
        %v433 = vadd.f32 0.0, %v432
        %v434 = vpop.f32.mrb[0].mxu0
        %v435 = vadd.f32 0.0, %v434
        %436 = vmatprep.mubr.bf16.mxu0 0
        %437 = vmatmul.mubr.bf16.gmra.mrb[0].mxu0 %v329
        %v438 = vpop.f32.mrb[0].mxu0
        %v439 = vadd.f32 0.0, %v438
        %v440 = vpop.f32.mrb[0].mxu0
        %v441 = vadd.f32 0.0, %v440
        %v442 = vpop.f32.mrb[0].mxu0
        %v443 = vadd.f32 0.0, %v442
        %v444 = vpop.f32.mrb[0].mxu0
        %v445 = vadd.f32 0.0, %v444
        %446 = vmatprep.mubr.bf16.mxu0 0
        %447 = vmatmul.mubr.bf16.gmra.mrb[0].mxu0 %v332
        %v448 = vpop.f32.mrb[0].mxu0
        %v449 = vadd.f32 0.0, %v448
        %v450 = vpop.f32.mrb[0].mxu0
        %v451 = vadd.f32 0.0, %v450
        %v452 = vpop.f32.mrb[0].mxu0
        %v453 = vadd.f32 0.0, %v452
        %v454 = vpop.f32.mrb[0].mxu0
        %v455 = vadd.f32 0.0, %v454
        %456 = vmatprep.mubr.bf16.mxu0 0
        %457 = vmatmul.mubr.bf16.gmra.mrb[0].mxu0 %v335
        %v458 = vpop.f32.mrb[0].mxu0
        %v459 = vadd.f32 0.0, %v458
        %v460 = vpop.f32.mrb[0].mxu0
        %v461 = vadd.f32 0.0, %v460
        %v462 = vpop.f32.mrb[0].mxu0
        %v463 = vadd.f32 0.0, %v462
        %v464 = vpop.f32.mrb[0].mxu0
        %v465 = vadd.f32 0.0, %v464
        %466 = vmatprep.mubr.bf16.mxu0 0
        %467 = vmatmul.mubr.bf16.gmra.mrb[0].mxu0 %v338
        %v468 = vpop.f32.mrb[0].mxu0
        %v469 = vadd.f32 0.0, %v468
        %v470 = vpop.f32.mrb[0].mxu0
        %v471 = vadd.f32 0.0, %v470
        %v472 = vpop.f32.mrb[0].mxu0
        %v473 = vadd.f32 0.0, %v472
        %v474 = vpop.f32.mrb[0].mxu0
        %v475 = vadd.f32 0.0, %v474
        %476 = vmatprep.mubr.bf16.mxu0 0
        %477 = vmatmul.mubr.bf16.gmra.mrb[0].mxu0 %v341
        %v478 = vpop.f32.mrb[0].mxu0
        %v479 = vadd.f32 0.0, %v478
        %v480 = vpop.f32.mrb[0].mxu0
        %v481 = vadd.f32 0.0, %v480
        %v482 = vpop.f32.mrb[0].mxu0
        %v483 = vadd.f32 0.0, %v482
        %v484 = vpop.f32.mrb[0].mxu0
        %v485 = vadd.f32 0.0, %v484
        %486 = vmatprep.mubr.bf16.mxu0 0
        %487 = vmatmul.mubr.bf16.gmra.mrb[0].mxu0 %v344
        %v488 = vpop.f32.mrb[0].mxu0
        %v489 = vadd.f32 0.0, %v488
        %v490 = vpop.f32.mrb[0].mxu0
        %v491 = vadd.f32 0.0, %v490
        %v492 = vpop.f32.mrb[0].mxu0
        %v493 = vadd.f32 0.0, %v492
        %v494 = vpop.f32.mrb[0].mxu0
        %v495 = vadd.f32 0.0, %v494
        %496 = vmatprep.mubr.bf16.mxu0 0
        %497 = vmatmul.mubr.bf16.gmra.mrb[0].mxu0 %v347
        %v498 = vpop.f32.mrb[0].mxu0
        %v499 = vadd.f32 0.0, %v498
        %v500 = vpop.f32.mrb[0].mxu0
        %v501 = vadd.f32 0.0, %v500
        %v502 = vpop.f32.mrb[0].mxu0
        %v503 = vadd.f32 0.0, %v502
        %v504 = vpop.f32.mrb[0].mxu0
        %v505 = vadd.f32 0.0, %v504
        %506 = vmatprep.mubr.bf16.mxu0 0
        %507 = vmatmul.mubr.bf16.gmra.mrb[0].mxu0 %v350
        %v508 = vpop.f32.mrb[0].mxu0
        %v509 = vadd.f32 0.0, %v508
        %v510 = vpop.f32.mrb[0].mxu0
        %v511 = vadd.f32 0.0, %v510
        %v512 = vpop.f32.mrb[0].mxu0
        %v513 = vadd.f32 0.0, %v512
        %v514 = vpop.f32.mrb[0].mxu0
        %v515 = vadd.f32 0.0, %v514
        %516 = vmatprep.mubr.bf16.mxu0 0
        %517 = vmatmul.mubr.bf16.gmra.mrb[0].mxu0 %v353
        %v518 = vpop.f32.mrb[0].mxu0
        %v519 = vadd.f32 0.0, %v518
        %v520 = vpop.f32.mrb[0].mxu0
        %v521 = vadd.f32 0.0, %v520
        %v522 = vpop.f32.mrb[0].mxu0
        %v523 = vadd.f32 0.0, %v522
        %v524 = vpop.f32.mrb[0].mxu0
        %v525 = vadd.f32 0.0, %v524
        %526 = vmatprep.mubr.bf16.mxu0 0
        %527 = vmatmul.mubr.bf16.gmra.mrb[0].mxu0 %v356
        %v528 = vpop.f32.mrb[0].mxu0
        %v529 = vadd.f32 0.0, %v528
        %v530 = vpop.f32.mrb[0].mxu0
        %v531 = vadd.f32 0.0, %v530
        %v532 = vpop.f32.mrb[0].mxu0
        %v533 = vadd.f32 0.0, %v532
        %v534 = vpop.f32.mrb[0].mxu0
        %v535 = vadd.f32 0.0, %v534
        %536 = vmatprep.mubr.bf16.mxu0 0
        %537 = vmatmul.mubr.bf16.gmra.mrb[0].mxu0 %v359
        %v538 = vpop.f32.mrb[0].mxu0
        %v539 = vadd.f32 0.0, %v538
        %v540 = vpop.f32.mrb[0].mxu0
        %v541 = vadd.f32 0.0, %v540
        %v542 = vpop.f32.mrb[0].mxu0
        %v543 = vadd.f32 0.0, %v542
        %v544 = vpop.f32.mrb[0].mxu0
        %v545 = vadd.f32 0.0, %v544
        %546 = vmatprep.mubr.bf16.mxu0 0
        %547 = vmatmul.mubr.bf16.gmra.mrb[0].mxu0 %v362
        %v548 = vpop.f32.mrb[0].mxu0
        %v549 = vadd.f32 0.0, %v548
        %v550 = vpop.f32.mrb[0].mxu0
        %v551 = vadd.f32 0.0, %v550
        %v552 = vpop.f32.mrb[0].mxu0
        %v553 = vadd.f32 0.0, %v552
        %v554 = vpop.f32.mrb[0].mxu0
        %v555 = vadd.f32 0.0, %v554
        %556 = vmatprep.mubr.bf16.mxu0 0
        %557 = vmatmul.mubr.bf16.gmra.mrb[0].mxu0 %v365
        %v558 = vpop.f32.mrb[0].mxu0
        %v559 = vadd.f32 0.0, %v558
        %v560 = vpop.f32.mrb[0].mxu0
        %v561 = vadd.f32 0.0, %v560
        %v562 = vpop.f32.mrb[0].mxu0
        %v563 = vadd.f32 0.0, %v562
        %v564 = vpop.f32.mrb[0].mxu0
        %v565 = vadd.f32 0.0, %v564
        %566 = vdwg.mxu0
        %v567 = vld [vmem:[%s2] sm:$0x3]
        %v569 = vlaneseq
        %v570 = vshrl.u32 %v569, 7
        %v571 = vsub.s32 0, %v570
        %v572 = vrot.slane %v567, %v571
        %v573 = vlaneseq
        %v574 = vshrl.u32 %v573, 7
        %v575 = vsub.s32 1, %v574
        %v576 = vrot.slane %v567, %v575
        %v579 = vmul.f32 %v409, %v572
        %v580 = vmul.f32 %v411, %v576
        %v581 = vmul.f32 %v413, %v572
        %v582 = vmul.f32 %v415, %v576
        %v583 = vmul.f32 %v419, %v572
        %v584 = vmul.f32 %v421, %v576
        %v585 = vmul.f32 %v423, %v572
        %v586 = vmul.f32 %v425, %v576
        %v587 = vmul.f32 %v429, %v572
        %v588 = vmul.f32 %v431, %v576
        %v589 = vmul.f32 %v433, %v572
        %v590 = vmul.f32 %v435, %v576
        %v591 = vmul.f32 %v439, %v572
        %v592 = vmul.f32 %v441, %v576
        %v593 = vmul.f32 %v443, %v572
        %v594 = vmul.f32 %v445, %v576
        %v595 = vmul.f32 %v449, %v572
        %v596 = vmul.f32 %v451, %v576
        %v597 = vmul.f32 %v453, %v572
        %v598 = vmul.f32 %v455, %v576
        %v599 = vmul.f32 %v459, %v572
        %v600 = vmul.f32 %v461, %v576
        %v601 = vmul.f32 %v463, %v572
        %v602 = vmul.f32 %v465, %v576
        %v603 = vmul.f32 %v469, %v572
        %v604 = vmul.f32 %v471, %v576
        %v605 = vmul.f32 %v473, %v572
        %v606 = vmul.f32 %v475, %v576
        %v607 = vmul.f32 %v479, %v572
        %v608 = vmul.f32 %v481, %v576
        %v609 = vmul.f32 %v483, %v572
        %v610 = vmul.f32 %v485, %v576
        %v611 = vmul.f32 %v489, %v572
        %v612 = vmul.f32 %v491, %v576
        %v613 = vmul.f32 %v493, %v572
        %v614 = vmul.f32 %v495, %v576
        %v615 = vmul.f32 %v499, %v572
        %v616 = vmul.f32 %v501, %v576
        %v617 = vmul.f32 %v503, %v572
        %v618 = vmul.f32 %v505, %v576
        %v619 = vmul.f32 %v509, %v572
        %v620 = vmul.f32 %v511, %v576
        %v621 = vmul.f32 %v513, %v572
        %v622 = vmul.f32 %v515, %v576
        %v623 = vmul.f32 %v519, %v572
        %v624 = vmul.f32 %v521, %v576
        %v625 = vmul.f32 %v523, %v572
        %v626 = vmul.f32 %v525, %v576
        %v627 = vmul.f32 %v529, %v572
        %v628 = vmul.f32 %v531, %v576
        %v629 = vmul.f32 %v533, %v572
        %v630 = vmul.f32 %v535, %v576
        %v631 = vmul.f32 %v539, %v572
        %v632 = vmul.f32 %v541, %v576
        %v633 = vmul.f32 %v543, %v572
        %v634 = vmul.f32 %v545, %v576
        %v635 = vmul.f32 %v549, %v572
        %v636 = vmul.f32 %v551, %v576
        %v637 = vmul.f32 %v553, %v572
        %v638 = vmul.f32 %v555, %v576
        %v639 = vmul.f32 %v559, %v572
        %v640 = vmul.f32 %v561, %v576
        %v641 = vmul.f32 %v563, %v572
        %v642 = vmul.f32 %v565, %v576
        %v643 = vld [vmem:[%s3] sm:$0x3]
        %v645 = vlaneseq
        %v646 = vshrl.u32 %v645, 7
        %v647 = vsub.s32 0, %v646
        %v648 = vrot.slane %v643, %v647
        %v649 = vlaneseq
        %v650 = vshrl.u32 %v649, 7
        %v651 = vsub.s32 1, %v650
        %v652 = vrot.slane %v643, %v651
        %v655 = vadd.f32 %v579, %v648
        %v656 = vadd.f32 %v580, %v652
        %v657 = vadd.f32 %v581, %v648
        %v658 = vadd.f32 %v582, %v652
        %v659 = vadd.f32 %v583, %v648
        %v660 = vadd.f32 %v584, %v652
        %v661 = vadd.f32 %v585, %v648
        %v662 = vadd.f32 %v586, %v652
        %v663 = vadd.f32 %v587, %v648
        %v664 = vadd.f32 %v588, %v652
        %v665 = vadd.f32 %v589, %v648
        %v666 = vadd.f32 %v590, %v652
        %v667 = vadd.f32 %v591, %v648
        %v668 = vadd.f32 %v592, %v652
        %v669 = vadd.f32 %v593, %v648
        %v670 = vadd.f32 %v594, %v652
        %v671 = vadd.f32 %v595, %v648
        %v672 = vadd.f32 %v596, %v652
        %v673 = vadd.f32 %v597, %v648
        %v674 = vadd.f32 %v598, %v652
        %v675 = vadd.f32 %v599, %v648
        %v676 = vadd.f32 %v600, %v652
        %v677 = vadd.f32 %v601, %v648
        %v678 = vadd.f32 %v602, %v652
        %v679 = vadd.f32 %v603, %v648
        %v680 = vadd.f32 %v604, %v652
        %v681 = vadd.f32 %v605, %v648
        %v682 = vadd.f32 %v606, %v652
        %v683 = vadd.f32 %v607, %v648
        %v684 = vadd.f32 %v608, %v652
        %v685 = vadd.f32 %v609, %v648
        %v686 = vadd.f32 %v610, %v652
        %v687 = vadd.f32 %v611, %v648
        %v688 = vadd.f32 %v612, %v652
        %v689 = vadd.f32 %v613, %v648
        %v690 = vadd.f32 %v614, %v652
        %v691 = vadd.f32 %v615, %v648
        %v692 = vadd.f32 %v616, %v652
        %v693 = vadd.f32 %v617, %v648
        %v694 = vadd.f32 %v618, %v652
        %v695 = vadd.f32 %v619, %v648
        %v696 = vadd.f32 %v620, %v652
        %v697 = vadd.f32 %v621, %v648
        %v698 = vadd.f32 %v622, %v652
        %v699 = vadd.f32 %v623, %v648
        %v700 = vadd.f32 %v624, %v652
        %v701 = vadd.f32 %v625, %v648
        %v702 = vadd.f32 %v626, %v652
        %v703 = vadd.f32 %v627, %v648
        %v704 = vadd.f32 %v628, %v652
        %v705 = vadd.f32 %v629, %v648
        %v706 = vadd.f32 %v630, %v652
        %v707 = vadd.f32 %v631, %v648
        %v708 = vadd.f32 %v632, %v652
        %v709 = vadd.f32 %v633, %v648
        %v710 = vadd.f32 %v634, %v652
        %v711 = vadd.f32 %v635, %v648
        %v712 = vadd.f32 %v636, %v652
        %v713 = vadd.f32 %v637, %v648
        %v714 = vadd.f32 %v638, %v652
        %v715 = vadd.f32 %v639, %v648
        %v716 = vadd.f32 %v640, %v652
        %v717 = vadd.f32 %v641, %v648
        %v718 = vadd.f32 %v642, %v652
        %v719 = vmax.f32 %v655, 0.0
        %v720 = vmax.f32 %v656, 0.0
        %v721 = vmax.f32 %v657, 0.0
        %v722 = vmax.f32 %v658, 0.0
        %v723 = vmax.f32 %v659, 0.0
        %v724 = vmax.f32 %v660, 0.0
        %v725 = vmax.f32 %v661, 0.0
        %v726 = vmax.f32 %v662, 0.0
        %v727 = vmax.f32 %v663, 0.0
        %v728 = vmax.f32 %v664, 0.0
        %v729 = vmax.f32 %v665, 0.0
        %v730 = vmax.f32 %v666, 0.0
        %v731 = vmax.f32 %v667, 0.0
        %v732 = vmax.f32 %v668, 0.0
        %v733 = vmax.f32 %v669, 0.0
        %v734 = vmax.f32 %v670, 0.0
        %v735 = vmax.f32 %v671, 0.0
        %v736 = vmax.f32 %v672, 0.0
        %v737 = vmax.f32 %v673, 0.0
        %v738 = vmax.f32 %v674, 0.0
        %v739 = vmax.f32 %v675, 0.0
        %v740 = vmax.f32 %v676, 0.0
        %v741 = vmax.f32 %v677, 0.0
        %v742 = vmax.f32 %v678, 0.0
        %v743 = vmax.f32 %v679, 0.0
        %v744 = vmax.f32 %v680, 0.0
        %v745 = vmax.f32 %v681, 0.0
        %v746 = vmax.f32 %v682, 0.0
        %v747 = vmax.f32 %v683, 0.0
        %v748 = vmax.f32 %v684, 0.0
        %v749 = vmax.f32 %v685, 0.0
        %v750 = vmax.f32 %v686, 0.0
        %v751 = vmax.f32 %v687, 0.0
        %v752 = vmax.f32 %v688, 0.0
        %v753 = vmax.f32 %v689, 0.0
        %v754 = vmax.f32 %v690, 0.0
        %v755 = vmax.f32 %v691, 0.0
        %v756 = vmax.f32 %v692, 0.0
        %v757 = vmax.f32 %v693, 0.0
        %v758 = vmax.f32 %v694, 0.0
        %v759 = vmax.f32 %v695, 0.0
        %v760 = vmax.f32 %v696, 0.0
        %v761 = vmax.f32 %v697, 0.0
        %v762 = vmax.f32 %v698, 0.0
        %v763 = vmax.f32 %v699, 0.0
        %v764 = vmax.f32 %v700, 0.0
        %v765 = vmax.f32 %v701, 0.0
        %v766 = vmax.f32 %v702, 0.0
        %v767 = vmax.f32 %v703, 0.0
        %v768 = vmax.f32 %v704, 0.0
        %v769 = vmax.f32 %v705, 0.0
        %v770 = vmax.f32 %v706, 0.0
        %v771 = vmax.f32 %v707, 0.0
        %v772 = vmax.f32 %v708, 0.0
        %v773 = vmax.f32 %v709, 0.0
        %v774 = vmax.f32 %v710, 0.0
        %v775 = vmax.f32 %v711, 0.0
        %v776 = vmax.f32 %v712, 0.0
        %v777 = vmax.f32 %v713, 0.0
        %v778 = vmax.f32 %v714, 0.0
        %v779 = vmax.f32 %v715, 0.0
        %v780 = vmax.f32 %v716, 0.0
        %v781 = vmax.f32 %v717, 0.0
        %v782 = vmax.f32 %v718, 0.0
        %v783 = vpack.c.bf16 %v721, %v719
        %v784 = vpack.c.bf16 %v725, %v723
        %v785 = vpack.c.bf16 %v729, %v727
        %v786 = vpack.c.bf16 %v733, %v731
        %v787 = vpack.c.bf16 %v737, %v735
        %v788 = vpack.c.bf16 %v741, %v739
        %v789 = vpack.c.bf16 %v745, %v743
        %v790 = vpack.c.bf16 %v749, %v747
        %v791 = vpack.c.bf16 %v753, %v751
        %v792 = vpack.c.bf16 %v757, %v755
        %v793 = vpack.c.bf16 %v761, %v759
        %v794 = vpack.c.bf16 %v765, %v763
        %v795 = vpack.c.bf16 %v769, %v767
        %v796 = vpack.c.bf16 %v773, %v771
        %v797 = vpack.c.bf16 %v777, %v775
        %v798 = vpack.c.bf16 %v781, %v779
        %v815 = vunpack.c.l.b16 %v783
        %v816 = vunpack.c.h.b16 %v783
        %v817 = vunpack.c.l.b16 %v784
        %v818 = vunpack.c.h.b16 %v784
        %v819 = vunpack.c.l.b16 %v785
        %v820 = vunpack.c.h.b16 %v785
        %v821 = vunpack.c.l.b16 %v786
        %v822 = vunpack.c.h.b16 %v786
        %v823 = vunpack.c.l.b16 %v787
        %v824 = vunpack.c.h.b16 %v787
        %v825 = vunpack.c.l.b16 %v788
        %v826 = vunpack.c.h.b16 %v788
        %v827 = vunpack.c.l.b16 %v789
        %v828 = vunpack.c.h.b16 %v789
        %v829 = vunpack.c.l.b16 %v790
        %v830 = vunpack.c.h.b16 %v790
        %v831 = vunpack.c.l.b16 %v791
        %v832 = vunpack.c.h.b16 %v791
        %v833 = vunpack.c.l.b16 %v792
        %v834 = vunpack.c.h.b16 %v792
        %v835 = vunpack.c.l.b16 %v793
        %v836 = vunpack.c.h.b16 %v793
        %v837 = vunpack.c.l.b16 %v794
        %v838 = vunpack.c.h.b16 %v794
        %v839 = vunpack.c.l.b16 %v795
        %v840 = vunpack.c.h.b16 %v795
        %v841 = vunpack.c.l.b16 %v796
        %v842 = vunpack.c.h.b16 %v796
        %v843 = vunpack.c.l.b16 %v797
        %v844 = vunpack.c.h.b16 %v797
        %v845 = vunpack.c.l.b16 %v798
        %v846 = vunpack.c.h.b16 %v798
        %v847 = vpack.c.b16 %v815, %v815
        %v848 = vpack.c.b16 %v816, %v816
        %v849 = vpack.c.b16 %v817, %v817
        %v850 = vpack.c.b16 %v818, %v818
        %v851 = vpack.c.b16 %v819, %v819
        %v852 = vpack.c.b16 %v820, %v820
        %v853 = vpack.c.b16 %v821, %v821
        %v854 = vpack.c.b16 %v822, %v822
        %v855 = vpack.c.b16 %v823, %v823
        %v856 = vpack.c.b16 %v824, %v824
        %v857 = vpack.c.b16 %v825, %v825
        %v858 = vpack.c.b16 %v826, %v826
        %v859 = vpack.c.b16 %v827, %v827
        %v860 = vpack.c.b16 %v828, %v828
        %v861 = vpack.c.b16 %v829, %v829
        %v862 = vpack.c.b16 %v830, %v830
        %v863 = vpack.c.b16 %v831, %v831
        %v864 = vpack.c.b16 %v832, %v832
        %v865 = vpack.c.b16 %v833, %v833
        %v866 = vpack.c.b16 %v834, %v834
        %v867 = vpack.c.b16 %v835, %v835
        %v868 = vpack.c.b16 %v836, %v836
        %v869 = vpack.c.b16 %v837, %v837
        %v870 = vpack.c.b16 %v838, %v838
        %v871 = vpack.c.b16 %v839, %v839
        %v872 = vpack.c.b16 %v840, %v840
        %v873 = vpack.c.b16 %v841, %v841
        %v874 = vpack.c.b16 %v842, %v842
        %v875 = vpack.c.b16 %v843, %v843
        %v876 = vpack.c.b16 %v844, %v844
        %v877 = vpack.c.b16 %v845, %v845
        %v878 = vpack.c.b16 %v846, %v846
        %911 = vst [vmem:[%s191] sm:$0xf] %v847
        %912 = vst [vmem:[%s191 + $0x4] sm:$0xf] %v848
        %913 = vst [vmem:[%s191 + $0x8] sm:$0xf] %v849
        %914 = vst [vmem:[%s191 + $0xc] sm:$0xf] %v850
        %915 = vst [vmem:[%s191 + $0x20] sm:$0xf] %v851
        %916 = vst [vmem:[%s191 + $0x24] sm:$0xf] %v852
        %917 = vst [vmem:[%s191 + $0x28] sm:$0xf] %v853
        %918 = vst [vmem:[%s191 + $0x2c] sm:$0xf] %v854
        %919 = vst [vmem:[%s191 + $0x40] sm:$0xf] %v855
        %920 = vst [vmem:[%s191 + $0x44] sm:$0xf] %v856
        %921 = vst [vmem:[%s191 + $0x48] sm:$0xf] %v857
        %922 = vst [vmem:[%s191 + $0x4c] sm:$0xf] %v858
        %923 = vst [vmem:[%s191 + $0x60] sm:$0xf] %v859
        %924 = vst [vmem:[%s191 + $0x64] sm:$0xf] %v860
        %925 = vst [vmem:[%s191 + $0x68] sm:$0xf] %v861
        %926 = vst [vmem:[%s191 + $0x6c] sm:$0xf] %v862
        %927 = vst [vmem:[%s191 + $0x80] sm:$0xf] %v863
        %928 = vst [vmem:[%s191 + $0x84] sm:$0xf] %v864
        %929 = vst [vmem:[%s191 + $0x88] sm:$0xf] %v865
        %930 = vst [vmem:[%s191 + $0x8c] sm:$0xf] %v866
        %931 = vst [vmem:[%s191 + $0xa0] sm:$0xf] %v867
        %932 = vst [vmem:[%s191 + $0xa4] sm:$0xf] %v868
        %933 = vst [vmem:[%s191 + $0xa8] sm:$0xf] %v869
        %934 = vst [vmem:[%s191 + $0xac] sm:$0xf] %v870
        %935 = vst [vmem:[%s191 + $0xc0] sm:$0xf] %v871
        %936 = vst [vmem:[%s191 + $0xc4] sm:$0xf] %v872
        %937 = vst [vmem:[%s191 + $0xc8] sm:$0xf] %v873
        %938 = vst [vmem:[%s191 + $0xcc] sm:$0xf] %v874
        %939 = vst [vmem:[%s191 + $0xe0] sm:$0xf] %v875
        %940 = vst [vmem:[%s191 + $0xe4] sm:$0xf] %v876
        %941 = vst [vmem:[%s191 + $0xe8] sm:$0xf] %v877
        %942 = vst [vmem:[%s191 + $0xec] sm:$0xf] %v878
        %v943 = vpack.c.bf16 %v722, %v720
        %v944 = vpack.c.bf16 %v726, %v724
        %v945 = vpack.c.bf16 %v730, %v728
        %v946 = vpack.c.bf16 %v734, %v732
        %v947 = vpack.c.bf16 %v738, %v736
        %v948 = vpack.c.bf16 %v742, %v740
        %v949 = vpack.c.bf16 %v746, %v744
        %v950 = vpack.c.bf16 %v750, %v748
        %v951 = vpack.c.bf16 %v754, %v752
        %v952 = vpack.c.bf16 %v758, %v756
        %v953 = vpack.c.bf16 %v762, %v760
        %v954 = vpack.c.bf16 %v766, %v764
        %v955 = vpack.c.bf16 %v770, %v768
        %v956 = vpack.c.bf16 %v774, %v772
        %v957 = vpack.c.bf16 %v778, %v776
        %v958 = vpack.c.bf16 %v782, %v780
        %v975 = vunpack.c.l.b16 %v943
        %v976 = vunpack.c.h.b16 %v943
        %v977 = vunpack.c.l.b16 %v944
        %v978 = vunpack.c.h.b16 %v944
        %v979 = vunpack.c.l.b16 %v945
        %v980 = vunpack.c.h.b16 %v945
        %v981 = vunpack.c.l.b16 %v946
        %v982 = vunpack.c.h.b16 %v946
        %v983 = vunpack.c.l.b16 %v947
        %v984 = vunpack.c.h.b16 %v947
        %v985 = vunpack.c.l.b16 %v948
        %v986 = vunpack.c.h.b16 %v948
        %v987 = vunpack.c.l.b16 %v949
        %v988 = vunpack.c.h.b16 %v949
        %v989 = vunpack.c.l.b16 %v950
        %v990 = vunpack.c.h.b16 %v950
        %v991 = vunpack.c.l.b16 %v951
        %v992 = vunpack.c.h.b16 %v951
        %v993 = vunpack.c.l.b16 %v952
        %v994 = vunpack.c.h.b16 %v952
        %v995 = vunpack.c.l.b16 %v953
        %v996 = vunpack.c.h.b16 %v953
        %v997 = vunpack.c.l.b16 %v954
        %v998 = vunpack.c.h.b16 %v954
        %v999 = vunpack.c.l.b16 %v955
        %v1000 = vunpack.c.h.b16 %v955
        %v1001 = vunpack.c.l.b16 %v956
        %v1002 = vunpack.c.h.b16 %v956
        %v1003 = vunpack.c.l.b16 %v957
        %v1004 = vunpack.c.h.b16 %v957
        %v1005 = vunpack.c.l.b16 %v958
        %v1006 = vunpack.c.h.b16 %v958
        %v1007 = vpack.c.b16 %v975, %v975
        %v1008 = vpack.c.b16 %v976, %v976
        %v1009 = vpack.c.b16 %v977, %v977
        %v1010 = vpack.c.b16 %v978, %v978
        %v1011 = vpack.c.b16 %v979, %v979
        %v1012 = vpack.c.b16 %v980, %v980
        %v1013 = vpack.c.b16 %v981, %v981
        %v1014 = vpack.c.b16 %v982, %v982
        %v1015 = vpack.c.b16 %v983, %v983
        %v1016 = vpack.c.b16 %v984, %v984
        %v1017 = vpack.c.b16 %v985, %v985
        %v1018 = vpack.c.b16 %v986, %v986
        %v1019 = vpack.c.b16 %v987, %v987
        %v1020 = vpack.c.b16 %v988, %v988
        %v1021 = vpack.c.b16 %v989, %v989
        %v1022 = vpack.c.b16 %v990, %v990
        %v1023 = vpack.c.b16 %v991, %v991
        %v1024 = vpack.c.b16 %v992, %v992
        %v1025 = vpack.c.b16 %v993, %v993
        %v1026 = vpack.c.b16 %v994, %v994
        %v1027 = vpack.c.b16 %v995, %v995
        %v1028 = vpack.c.b16 %v996, %v996
        %v1029 = vpack.c.b16 %v997, %v997
        %v1030 = vpack.c.b16 %v998, %v998
        %v1031 = vpack.c.b16 %v999, %v999
        %v1032 = vpack.c.b16 %v1000, %v1000
        %v1033 = vpack.c.b16 %v1001, %v1001
        %v1034 = vpack.c.b16 %v1002, %v1002
        %v1035 = vpack.c.b16 %v1003, %v1003
        %v1036 = vpack.c.b16 %v1004, %v1004
        %v1037 = vpack.c.b16 %v1005, %v1005
        %v1038 = vpack.c.b16 %v1006, %v1006
        %s1071 = scalar_lea.vmem %s191, 16 [#allocation2]
        %1072 = vst [vmem:[%s1071] sm:$0xf] %v1007
        %1073 = vst [vmem:[%s1071 + $0x4] sm:$0xf] %v1008
        %1074 = vst [vmem:[%s1071 + $0x8] sm:$0xf] %v1009
        %1075 = vst [vmem:[%s1071 + $0xc] sm:$0xf] %v1010
        %1076 = vst [vmem:[%s1071 + $0x20] sm:$0xf] %v1011
        %1077 = vst [vmem:[%s1071 + $0x24] sm:$0xf] %v1012
        %1078 = vst [vmem:[%s1071 + $0x28] sm:$0xf] %v1013
        %1079 = vst [vmem:[%s1071 + $0x2c] sm:$0xf] %v1014
        %1080 = vst [vmem:[%s1071 + $0x40] sm:$0xf] %v1015
        %1081 = vst [vmem:[%s1071 + $0x44] sm:$0xf] %v1016
        %1082 = vst [vmem:[%s1071 + $0x48] sm:$0xf] %v1017
        %1083 = vst [vmem:[%s1071 + $0x4c] sm:$0xf] %v1018
        %1084 = vst [vmem:[%s1071 + $0x60] sm:$0xf] %v1019
        %1085 = vst [vmem:[%s1071 + $0x64] sm:$0xf] %v1020
        %1086 = vst [vmem:[%s1071 + $0x68] sm:$0xf] %v1021
        %1087 = vst [vmem:[%s1071 + $0x6c] sm:$0xf] %v1022
        %1088 = vst [vmem:[%s1071 + $0x80] sm:$0xf] %v1023
        %1089 = vst [vmem:[%s1071 + $0x84] sm:$0xf] %v1024
        %1090 = vst [vmem:[%s1071 + $0x88] sm:$0xf] %v1025
        %1091 = vst [vmem:[%s1071 + $0x8c] sm:$0xf] %v1026
        %1092 = vst [vmem:[%s1071 + $0xa0] sm:$0xf] %v1027
        %1093 = vst [vmem:[%s1071 + $0xa4] sm:$0xf] %v1028
        %1094 = vst [vmem:[%s1071 + $0xa8] sm:$0xf] %v1029
        %1095 = vst [vmem:[%s1071 + $0xac] sm:$0xf] %v1030
        %1096 = vst [vmem:[%s1071 + $0xc0] sm:$0xf] %v1031
        %1097 = vst [vmem:[%s1071 + $0xc4] sm:$0xf] %v1032
        %1098 = vst [vmem:[%s1071 + $0xc8] sm:$0xf] %v1033
        %1099 = vst [vmem:[%s1071 + $0xcc] sm:$0xf] %v1034
        %1100 = vst [vmem:[%s1071 + $0xe0] sm:$0xf] %v1035
        %1101 = vst [vmem:[%s1071 + $0xe4] sm:$0xf] %v1036
        %1102 = vst [vmem:[%s1071 + $0xe8] sm:$0xf] %v1037
        %1103 = vst [vmem:[%s1071 + $0xec] sm:$0xf] %v1038
        %s1104 = sand.u32 %s115, 1
        %s1105 = scalar_lea.sflag [#allocation3], %s1104
        %s1106 = sand.u32 %s115, 1
        %s1107 = smul.addr %s1106, 256
        %s1108 = scalar_lea.vmem [#allocation2], %s1107
        // Predicated region
        $region37: #{tpu_custom_call.1} parent=35 // pred_check
          %p1109 = pneg %p125
        $region38: #{tpu_custom_call.1} parent=35 // pred_check_branch
          %1111 = sbr.rel (%p1109) target = $region40
        $region39: #{tpu_custom_call.1} parent=35 // pred_region
          %s1112 = smul.u32 8, %s18
          %s1114 = ssub.s32 4096, 4096
          %1115 = vsyncadd %s1105, %s1114
          %s1116 = smul.addr %s1112, 8
          %s1117 = smul.addr %s1116, 64
          %s1118 = scalar_lea.hbm %s4, %s1117
          %s1119 = sshll.u32 %s1108, 4
          %s1120 = int_to_ptr.vmem [resolvable:$true] %s1119
          %1125 = dma.vmem_to_hbm [thread:$0]  %s1120, 4096, %s1118, %s1105, 64, 64, 4
        $region40: #{tpu_custom_call.1} parent=35 // pred_fallthru
          _
      $region36: #{tpu_custom_call.1} parent=5 // pred_fallthru
        _
      %p1126 = scmp.le.s32.totalorder 2, %s13
      // Predicated region
      $region41: #{tpu_custom_call.1} parent=5 // pred_check
        %p1127 = pneg %p1126
      $region42: #{tpu_custom_call.1} parent=5 // pred_check_branch
        %1129 = sbr.rel (%p1127) target = $region44
      $region43: #{tpu_custom_call.1} parent=5 // pred_region
        %s1130 = ssub.s32 %s13, 2
        // Predicated region
        $region45: #{tpu_custom_call.1} parent=43 // pred_check
          %p1131 = pneg %p131
        $region46: #{tpu_custom_call.1} parent=43 // pred_check_branch
          %1133 = sbr.rel (%p1131) target = $region48
        $region47: #{tpu_custom_call.1} parent=43 // pred_region
          %s1134 = sand.u32 %s116, 1
          %s1135 = scalar_lea.sflag [#allocation3], %s1134
          %s1136 = sand.u32 %s116, 1
          %s1137 = smul.addr %s1136, 256
          %s1138 = scalar_lea.vmem [#allocation2], %s1137
          %1139 = dma.done %s1135, 4096
        $region48: #{tpu_custom_call.1} parent=43 // pred_fallthru
          _
      $region44: #{tpu_custom_call.1} parent=5 // pred_fallthru
        _
    $region6: #{tpu_custom_call.1} parent=1 // loop_footer
      %s17 = sadd.s32 1, %s13
    $region7: #{tpu_custom_call.1} parent=1 // loop_footer_branch
      %12 = sbr.rel target = $region3
    $region8: #{tpu_custom_call.1} parent=1 // loop_exit
      _
    %1140 = vsyncpa [#allocation3], 1
    %s1141 = scalar_lea.sflag [#allocation3], 1
    %1142 = vsyncpa %s1141, 1

</llo_original>
